<compile_context>
chip_gen: v7x
topology: tpu7x:2x2x1
jax: 0.10.0
libtpu: 0.0.40
codegen_flags: <defaults>
</compile_context>

<pallas_src>
import functools

import jax
import jax.numpy as jnp
from jax import lax
from jax.experimental import pallas as pl
from jax.experimental.pallas import tpu as pltpu


_SUB_LANES = 512                   # in-kernel lane sub-tile (bounds vreg pressure)
_BLOCK_BUDGET = 4 * 1024 * 1024    # target bytes of (x + out) block per grid step


def _round_up(x, m):
    return (x + m - 1) // m * m


def _cdiv(a, b):
    return -(-a // b)


def _mlp_kernel(x_ref, w1_ref, b1_ref, w2_ref, b2_ref, o_ref, *, kb, sub, n_sub):
    """o = W2 @ relu(W1 @ x + b1) + b2 + x over one [kb, D, tn] NCHW block."""
    w1 = w1_ref[...]               # [H, D]  activation dtype (cast once in wrapper)
    w2 = w2_ref[...]               # [H, H]
    b1 = b1_ref[...]               # [H, 1]  f32
    b2 = b2_ref[...]               # [H, 1]  f32

    def compute(b, j):
        x = x_ref[b, :, pl.ds(j, sub)]                                    # [D, sub]
        h = jnp.dot(w1, x, preferred_element_type=jnp.float32)            # [H, sub] f32
        h = jnp.maximum(h + b1, 0.0)                                      # bias + ReLU
        # Dropout p=0.15 -> identity in eval mode.
        h = jnp.dot(w2, h.astype(w2.dtype), preferred_element_type=jnp.float32)
        o_ref[b, :, pl.ds(j, sub)] = (
            h + b2 + x.astype(jnp.float32)                                # residual, f32
        ).astype(o_ref.dtype)

    trips = kb * n_sub
    if trips == 1:
        compute(0, 0)
    else:
        def body(i, carry):
            b = i // n_sub
            j = pl.multiple_of((i % n_sub) * sub, sub)
            compute(b, j)
            return carry
        lax.fori_loop(0, trips, body, 0, unroll=(trips <= 8))


def _choose_tiling(batch, length, d, h, itemsize):
    """Pick (kb batches/step, tn lanes/step, sub lanes per inner iteration)."""
    per_lane = (d + h) * itemsize                      # x + out bytes per lane per batch
    l128 = _round_up(max(length, 1), 128)

    if l128 <= _SUB_LANES:
        tn, sub = l128, l128                           # whole row, single chunk
    else:
        cap = max(_SUB_LANES,
                  (_BLOCK_BUDGET // per_lane) // _SUB_LANES * _SUB_LANES)
        tn = min(_round_up(length, _SUB_LANES), cap)
        sub = _SUB_LANES

    kb = max(1, _BLOCK_BUDGET // (per_lane * tn))
    kb = min(kb, batch)

    lane_tiles = _cdiv(length, tn)
    if lane_tiles == 1 and batch > 1:
        # Keep >= 2 grid steps so both v7x TensorCores get work.
        kb = min(kb, _cdiv(batch, 2))
    elif lane_tiles == 1 and batch == 1 and l128 >= 256:
        # Avoid collapsing to grid=(1,1): split the lane axis into two tiles.
        tn = _round_up(_cdiv(length, 2), 128)
        sub = min(sub, tn)
        if tn % sub:
            tn = _round_up(tn, sub)
    return kb, tn, sub


def _mlp_nchw(x3, w1, b1, w2, b2):
    """x3: [B, D, L] NCHW-flattened activations; returns [B, H, L]."""
    B, D, L = x3.shape
    H = w1.shape[0]
    itemsize = jnp.dtype(x3.dtype).itemsize

    kb, tn, sub = _choose_tiling(B, L, D, H, itemsize)
    n_sub = tn // sub
    grid = (_cdiv(B, kb), _cdiv(L, tn))

    w_itemsize = jnp.dtype(w1.dtype).itemsize
    w_bytes = (H * D + H * H) * w_itemsize + 2 * H * 4
    cost = pl.CostEstimate(
        flops=4 * B * L * D * H,                       # two channel matmuls
        transcendentals=0,
        bytes_accessed=B * L * (D + H) * itemsize + w_bytes,
    )

    blk_bytes = kb * tn * (D + H) * itemsize           # one (x + out) block
    vmem_limit = min(32 * 1024 * 1024,
                     max(8 * 1024 * 1024, 2 * blk_bytes + w_bytes + 4 * 1024 * 1024))

    kernel = functools.partial(_mlp_kernel, kb=kb, sub=sub, n_sub=n_sub)
    return pl.pallas_call(
        kernel,
        out_shape=jax.ShapeDtypeStruct((B, H, L), x3.dtype),
        grid_spec=pltpu.PrefetchScalarGridSpec(
            num_scalar_prefetch=0,
            grid=grid,
            in_specs=[
                pl.BlockSpec((kb, D, tn), lambda bi, li: (bi, 0, li)),   # x block
                pl.BlockSpec((H, D), lambda bi, li: (0, 0)),             # W1 (resident)
                pl.BlockSpec((H, 1), lambda bi, li: (0, 0)),             # b1
                pl.BlockSpec((H, H), lambda bi, li: (0, 0)),             # W2 (resident)
                pl.BlockSpec((H, 1), lambda bi, li: (0, 0)),             # b2
            ],
            out_specs=pl.BlockSpec((kb, H, tn), lambda bi, li: (bi, 0, li)),
        ),
        compiler_params=pltpu.CompilerParams(
            dimension_semantics=("parallel", "parallel"),
            vmem_limit_bytes=vmem_limit,
        ),
        cost_estimate=cost,
    )(x3, w1, b1, w2, b2)


def multi_layer_perceptron(x, params):
    """Forward pass matching the PyTorch module (eval mode).

    x: [B, D, N] or [B, D, N, W] (NCHW; W is typically 1 in STID).
    params: conv-layout weights:
        fc1_w [H, D, 1, 1], fc1_b [H], fc2_w [H, H, 1, 1], fc2_b [H].
    Returns an array with the same shape as x (H == D).
    """
    if x.ndim == 3:
        B, D, L = x.shape
    elif x.ndim == 4:
        B, D, N, W = x.shape
        L = N * W
    else:
        raise ValueError(f"expected 3D or 4D NCHW input, got shape {x.shape}")
    H = params["fc1_w"].shape[0]
    assert H == D, "residual link requires input_dim == hidden_dim"

    x3 = x.reshape(B, D, L)                            # free, contiguous reshape
    # 1x1 conv weight [out, in, 1, 1] -> [out, in]; cast ONCE here (not per step).
    w1 = params["fc1_w"].reshape(H, D).astype(x.dtype)
    w2 = params["fc2_w"].reshape(H, H).astype(x.dtype)
    b1 = params["fc1_b"].astype(jnp.float32).reshape(H, 1)
    b2 = params["fc2_b"].astype(jnp.float32).reshape(H, 1)

    out3 = _mlp_nchw(x3, w1, b1, w2, b2)
    return out3.reshape(x.shape)


def init_params(key, input_dim, hidden_dim, dtype=jnp.float32):
    k1, k2, k3, k4 = jax.random.split(key, 4)
    bound1 = 1.0 / (input_dim ** 0.5)
    bound2 = 1.0 / (hidden_dim ** 0.5)
    return {
        "fc1_w": jax.random.uniform(k1, (hidden_dim, input_dim, 1, 1),
                                    dtype, -bound1, bound1),
        "fc1_b": jax.random.uniform(k2, (hidden_dim,), dtype, -bound1, bound1),
        "fc2_w": jax.random.uniform(k3, (hidden_dim, hidden_dim, 1, 1),
                                    dtype, -bound2, bound2),
        "fc2_b": jax.random.uniform(k4, (hidden_dim,), dtype, -bound2, bound2),
    }


def _reference(x_nchw, params):
    """Pure-JAX reference of the PyTorch forward (eval mode)."""
    H = params["fc1_w"].shape[0]
    w1 = params["fc1_w"].reshape(H, -1)
    w2 = params["fc2_w"].reshape(H, H)
    b1 = params["fc1_b"]
    b2 = params["fc2_b"]
    h = jnp.einsum("bdnw,hd->bhnw", x_nchw, w1) + b1[None, :, None, None]
    h = jnp.maximum(h, 0.0)
    h = jnp.einsum("bdnw,hd->bhnw", h, w2) + b2[None, :, None, None]
    return h + x_nchw


if __name__ == "__main__":
    key = jax.random.PRNGKey(0)
    kp, k1, k2, k3 = jax.random.split(key, 4)

    D = 32
    params = init_params(kp, D, D)
    fwd = jax.jit(multi_layer_perceptron)

    # 1) STID-like shapes: [B, D, N, 1], ragged N -> masked edge lane tile, no pad pass.
    x1 = jax.random.normal(k1, (2, D, 200, 1), jnp.float32)
    o1 = jax.block_until_ready(fwd(x1, params))
    assert o1.shape == x1.shape, o1.shape
    assert jnp.allclose(o1, _reference(x1, params), atol=1e-5, rtol=1e-5), \
        "mismatch vs reference (ragged L)"

    # 2) Tiny spatial extent (L < 128): single masked edge tile per batch.
    x2 = jax.random.normal(k2, (2, D, 16, 1), jnp.float32)
    o2 = jax.block_until_ready(fwd(x2, params))
    assert o2.shape == x2.shape, o2.shape
    assert jnp.allclose(o2, _reference(x2, params), atol=1e-5, rtol=1e-5), \
        "mismatch vs reference (tiny L)"

    # 3) Larger ragged L: exercises the in-kernel 512-lane fori_loop sub-chunking.
    x3 = jax.random.normal(k3, (2, D, 1000, 1), jnp.float32)
    o3 = jax.block_until_ready(fwd(x3, params))
    assert o3.shape == x3.shape, o3.shape
    assert jnp.allclose(o3, _reference(x3, params), atol=1e-5, rtol=1e-5), \
        "mismatch vs reference (sub-chunked path)"

    print("KERNEL_OK")
</pallas_src>

<mosaic_0001>
module attributes {stable_mosaic.version = 11 : i64} {
  func.func @_mlp_kernel(%arg0: i32, %arg1: i32, %arg2: memref<1x32x256xf32, #tpu.memory_space<vmem>>, %arg3: memref<32x32xf32, #tpu.memory_space<vmem>>, %arg4: memref<32x1xf32, #tpu.memory_space<vmem>>, %arg5: memref<32x32xf32, #tpu.memory_space<vmem>>, %arg6: memref<32x1xf32, #tpu.memory_space<vmem>>, %arg7: memref<1x32x256xf32, #tpu.memory_space<vmem>>) attributes {dimension_semantics = [#tpu.dimension_semantics<parallel>, #tpu.dimension_semantics<parallel>], iteration_bounds = array<i64: 2, 1>, scalar_prefetch = 0 : i64, scratch_operands = 0 : i64, tpu.core_type = #tpu.core_type<tc>, window_params = [{transform_indices = @transform_0, window_bounds = array<i64: 1, 32, 256>}, {pipeline_mode = #tpu.pipeline_mode<synchronous>, transform_indices = @transform_1, window_bounds = array<i64: 32, 32>}, {pipeline_mode = #tpu.pipeline_mode<synchronous>, transform_indices = @transform_2, window_bounds = array<i64: 32, 1>}, {pipeline_mode = #tpu.pipeline_mode<synchronous>, transform_indices = @transform_3, window_bounds = array<i64: 32, 32>}, {pipeline_mode = #tpu.pipeline_mode<synchronous>, transform_indices = @transform_4, window_bounds = array<i64: 32, 1>}, {transform_indices = @transform_5, window_bounds = array<i64: 1, 32, 256>}]} {
    %c0 = arith.constant 0 : index
    %c0_0 = arith.constant 0 : index
    %0 = vector.load %arg3[%c0, %c0_0] : memref<32x32xf32, #tpu.memory_space<vmem>>, vector<32x32xf32>
    %c0_1 = arith.constant 0 : index
    %c0_2 = arith.constant 0 : index
    %1 = vector.load %arg5[%c0_1, %c0_2] : memref<32x32xf32, #tpu.memory_space<vmem>>, vector<32x32xf32>
    %c0_3 = arith.constant 0 : index
    %c0_4 = arith.constant 0 : index
    %2 = vector.load %arg4[%c0_3, %c0_4] : memref<32x1xf32, #tpu.memory_space<vmem>>, vector<32x1xf32>
    %c0_5 = arith.constant 0 : index
    %c0_6 = arith.constant 0 : index
    %3 = vector.load %arg6[%c0_5, %c0_6] : memref<32x1xf32, #tpu.memory_space<vmem>>, vector<32x1xf32>
    %c0_7 = arith.constant 0 : index
    %c0_8 = arith.constant 0 : index
    %c0_9 = arith.constant 0 : index
    %4 = vector.load %arg2[%c0_7, %c0_8, %c0_9] : memref<1x32x256xf32, #tpu.memory_space<vmem>>, vector<1x32x256xf32>
    %5 = vector.shape_cast %4 : vector<1x32x256xf32> to vector<32x256xf32>
    %cst = arith.constant dense<0.000000e+00> : vector<32x256xf32>
    %6 = tpu.matmul %0, %5, %cst {dimension_numbers = #tpu.dot_dimension_numbers<[1], [0], [0], [1], [0, 0, 1, 1], [], []>} : vector<32x32xf32>, vector<32x256xf32>, vector<32x256xf32> -> vector<32x256xf32>
    %7 = vector.broadcast %2 : vector<32x1xf32> to vector<32x256xf32>
    %8 = arith.addf %6, %7 : vector<32x256xf32>
    %cst_10 = arith.constant 0.000000e+00 : f32
    %9 = vector.broadcast %cst_10 : f32 to vector<32x256xf32>
    %10 = arith.maximumf %8, %9 : vector<32x256xf32>
    %cst_11 = arith.constant dense<0.000000e+00> : vector<32x256xf32>
    %11 = tpu.matmul %1, %10, %cst_11 {dimension_numbers = #tpu.dot_dimension_numbers<[1], [0], [0], [1], [0, 0, 1, 1], [], []>} : vector<32x32xf32>, vector<32x256xf32>, vector<32x256xf32> -> vector<32x256xf32>
    %12 = vector.broadcast %3 : vector<32x1xf32> to vector<32x256xf32>
    %13 = arith.addf %11, %12 : vector<32x256xf32>
    %14 = arith.addf %13, %5 : vector<32x256xf32>
    %c0_12 = arith.constant 0 : index
    %c0_13 = arith.constant 0 : index
    %c0_14 = arith.constant 0 : index
    %15 = vector.load %arg7[%c0_12, %c0_13, %c0_14] : memref<1x32x256xf32, #tpu.memory_space<vmem>>, vector<1x32x256xf32>
    %16 = vector.shape_cast %15 : vector<1x32x256xf32> to vector<32x256xf32>
    %17 = vector.shape_cast %14 : vector<32x256xf32> to vector<1x32x256xf32>
    tpu.vector_store %arg7[%c0_12, %c0_13, %c0_14], %17 {strides = array<i32>} : memref<1x32x256xf32, #tpu.memory_space<vmem>>, vector<1x32x256xf32>,
    return
  }
  func.func @transform_0(%arg0: i32, %arg1: i32) -> (i32, i32, i32) {
    %c0_i32 = arith.constant 0 : i32
    %c0_i32_0 = arith.constant 0 : i32
    return %arg0, %c0_i32, %arg1 : i32, i32, i32
  }
  func.func @transform_1(%arg0: i32, %arg1: i32) -> (i32, i32) {
    %c0_i32 = arith.constant 0 : i32
    %c0_i32_0 = arith.constant 0 : i32
    %c0_i32_1 = arith.constant 0 : i32
    return %c0_i32, %c0_i32_0 : i32, i32
  }
  func.func @transform_2(%arg0: i32, %arg1: i32) -> (i32, i32) {
    %c0_i32 = arith.constant 0 : i32
    %c0_i32_0 = arith.constant 0 : i32
    %c0_i32_1 = arith.constant 0 : i32
    return %c0_i32, %c0_i32_0 : i32, i32
  }
  func.func @transform_3(%arg0: i32, %arg1: i32) -> (i32, i32) {
    %c0_i32 = arith.constant 0 : i32
    %c0_i32_0 = arith.constant 0 : i32
    %c0_i32_1 = arith.constant 0 : i32
    return %c0_i32, %c0_i32_0 : i32, i32
  }
  func.func @transform_4(%arg0: i32, %arg1: i32) -> (i32, i32) {
    %c0_i32 = arith.constant 0 : i32
    %c0_i32_0 = arith.constant 0 : i32
    %c0_i32_1 = arith.constant 0 : i32
    return %c0_i32, %c0_i32_0 : i32, i32
  }
  func.func @transform_5(%arg0: i32, %arg1: i32) -> (i32, i32, i32) {
    %c0_i32 = arith.constant 0 : i32
    %c0_i32_0 = arith.constant 0 : i32
    return %arg0, %c0_i32, %arg1 : i32, i32, i32
  }
}

</mosaic_0001>

<llo_original>
// kernel: multi_layer_perceptron.1
$region0: #{multi_layer_perceptron.1}
  #allocation0 [shape = 'u32[]', space=smem, size = 0x4, offset = 0x4, fixed_abs, tag = 'smem constant byte address 0x4 - core index']
  #allocation1 [shape = 'u32[144,128]{1,0:T(1,128)}', space=vmem, size = 0x12000, scoped, tag = 'internal scratch']
  %s0 = inlined_call_operand.vmem [shape: f32[2,32,200], index: 0, kind: input, shape index: {}]
  %s1 = inlined_call_operand.vmem [shape: f32[32,32], index: 1, kind: input, shape index: {}]
  %s2 = inlined_call_operand.vmem [shape: f32[32,1], index: 2, kind: input, shape index: {}]
  %s3 = inlined_call_operand.vmem [shape: f32[32,32], index: 3, kind: input, shape index: {}]
  %s4 = inlined_call_operand.vmem [shape: f32[32,1], index: 4, kind: input, shape index: {}]
  %s5 = inlined_call_operand.vmem [shape: f32[2,32,200], index: 5, kind: output, shape index: {}]
  %s6 = sld [smem:[#allocation0]]
  $region53: #{multi_layer_perceptron.1} parent=0
    _
  %s8 = ssub.s32 1, %s6
  %s9 = scalar_select 0, %s8, %s6
  loop: start=0, step=1, limit=4
  $region2: #{multi_layer_perceptron.1} parent=0 // loop_pre_header
    _
  $region3: #{multi_layer_perceptron.1} parent=0 // loop_header
    %s11 = sphi 0, %s15
    %p12 = scmp.ge.s32.totalorder %s11, 4
    %s18 = sphi 0, %s30
    %s19 = sphi 0, %s26
    %s20 = sphi 0, %s18
    %s21 = sphi 0, %s19
    %s22 = sphi 0, %s20
    %s23 = sphi 0, %s21
    %s35 = sphi 0, %s37
    %s38 = sphi 0, %s35
    %s39 = sphi 0, %s38
    %s55 = sphi 0, %s39
    %s59 = sphi 0, %s59
    %s61 = sphi 0, %s59
    %s62 = sphi 0, %s61
    %s76 = sphi 0, %s62
    %s80 = sphi 0, %s80
    %s82 = sphi 0, %s80
    %s83 = sphi 0, %s82
    %s97 = sphi 0, %s83
    %s101 = sphi 0, %s101
    %s103 = sphi 0, %s101
    %s104 = sphi 0, %s103
    %s118 = sphi 0, %s104
    %s122 = sphi 0, %s122
    %s124 = sphi 0, %s122
    %s125 = sphi 0, %s124
    %s139 = sphi 0, %s125
    %s147 = sphi 0, %s149
    %s150 = sphi 0, %s147
    %s151 = sphi 0, %s150
    %s167 = sphi 0, %s151
  $region4: #{multi_layer_perceptron.1} parent=0 // loop_header_branch
    %14 = sbr.rel (%p12) target = $region8
  $region5: #{multi_layer_perceptron.1} parent=0 // loop_body
    %s16 = ssub.s32 %s11, 1
    %s17 = ssub.s32 %s11, 2
    %s24 = sadd.s32 1, %s19
    %p25 = scmp.ge.s32.totalorder %s24, 1
    %s26 = scalar_select %p25, 0, %s24
    %s27 = sadd.s32 1, %s18
    %s28 = scalar_select %p25, %s27, %s18
    %p29 = scmp.ge.s32.totalorder %s28, 2
    %s30 = scalar_select %p29, 0, %s28
    %s31 = ssub.s32 %s18, %s30
    %s32 = ssub.s32 %s19, %s26
    %s33 = sor.u32 %s31, %s32
    %p34 = scmp.eq.s32.totalorder %s33, 0
    %s36 = sadd.s32 %s35, 1
    %s37 = scalar_select %p34, %s35, %s36
    %p40 = pneg %p34
    %p41 = scmp.eq.s32.totalorder %s11, 1
    %p42 = por %p40, %p41
    %p43 = scmp.ne.s32.totalorder %s35, %s38
    %p44 = scmp.eq.s32.totalorder %s11, 0
    %p45 = por %p43, %p44
    %p46 = scmp.ne.s32.totalorder %s35, %s38
    %p47 = scmp.eq.s32.totalorder %s16, 1
    %p48 = por %p46, %p47
    %p49 = scmp.ne.s32.totalorder %s38, %s39
    %p50 = scmp.eq.s32.totalorder %s16, 0
    %p51 = por %p49, %p50
    %p52 = scmp.ne.s32.totalorder %s38, %s39
    %p53 = scmp.eq.s32.totalorder %s17, 1
    %p54 = por %p52, %p53
    %p56 = scmp.ne.s32.totalorder %s39, %s55
    %p57 = scmp.eq.s32.totalorder %s17, 0
    %p58 = por %p56, %p57
    %s60 = sadd.s32 %s59, 1
    %p63 = scmp.eq.s32.totalorder %s11, 1
    %p64 = scmp.ne.s32.totalorder %s59, %s61
    %p65 = scmp.eq.s32.totalorder %s11, 0
    %p66 = por %p64, %p65
    %p67 = scmp.ne.s32.totalorder %s59, %s61
    %p68 = scmp.eq.s32.totalorder %s16, 1
    %p69 = por %p67, %p68
    %p70 = scmp.ne.s32.totalorder %s61, %s62
    %p71 = scmp.eq.s32.totalorder %s16, 0
    %p72 = por %p70, %p71
    %p73 = scmp.ne.s32.totalorder %s61, %s62
    %p74 = scmp.eq.s32.totalorder %s17, 1
    %p75 = por %p73, %p74
    %p77 = scmp.ne.s32.totalorder %s62, %s76
    %p78 = scmp.eq.s32.totalorder %s17, 0
    %p79 = por %p77, %p78
    %s81 = sadd.s32 %s80, 1
    %p84 = scmp.eq.s32.totalorder %s11, 1
    %p85 = scmp.ne.s32.totalorder %s80, %s82
    %p86 = scmp.eq.s32.totalorder %s11, 0
    %p87 = por %p85, %p86
    %p88 = scmp.ne.s32.totalorder %s80, %s82
    %p89 = scmp.eq.s32.totalorder %s16, 1
    %p90 = por %p88, %p89
    %p91 = scmp.ne.s32.totalorder %s82, %s83
    %p92 = scmp.eq.s32.totalorder %s16, 0
    %p93 = por %p91, %p92
    %p94 = scmp.ne.s32.totalorder %s82, %s83
    %p95 = scmp.eq.s32.totalorder %s17, 1
    %p96 = por %p94, %p95
    %p98 = scmp.ne.s32.totalorder %s83, %s97
    %p99 = scmp.eq.s32.totalorder %s17, 0
    %p100 = por %p98, %p99
    %s102 = sadd.s32 %s101, 1
    %p105 = scmp.eq.s32.totalorder %s11, 1
    %p106 = scmp.ne.s32.totalorder %s101, %s103
    %p107 = scmp.eq.s32.totalorder %s11, 0
    %p108 = por %p106, %p107
    %p109 = scmp.ne.s32.totalorder %s101, %s103
    %p110 = scmp.eq.s32.totalorder %s16, 1
    %p111 = por %p109, %p110
    %p112 = scmp.ne.s32.totalorder %s103, %s104
    %p113 = scmp.eq.s32.totalorder %s16, 0
    %p114 = por %p112, %p113
    %p115 = scmp.ne.s32.totalorder %s103, %s104
    %p116 = scmp.eq.s32.totalorder %s17, 1
    %p117 = por %p115, %p116
    %p119 = scmp.ne.s32.totalorder %s104, %s118
    %p120 = scmp.eq.s32.totalorder %s17, 0
    %p121 = por %p119, %p120
    %s123 = sadd.s32 %s122, 1
    %p126 = scmp.eq.s32.totalorder %s11, 1
    %p127 = scmp.ne.s32.totalorder %s122, %s124
    %p128 = scmp.eq.s32.totalorder %s11, 0
    %p129 = por %p127, %p128
    %p130 = scmp.ne.s32.totalorder %s122, %s124
    %p131 = scmp.eq.s32.totalorder %s16, 1
    %p132 = por %p130, %p131
    %p133 = scmp.ne.s32.totalorder %s124, %s125
    %p134 = scmp.eq.s32.totalorder %s16, 0
    %p135 = por %p133, %p134
    %p136 = scmp.ne.s32.totalorder %s124, %s125
    %p137 = scmp.eq.s32.totalorder %s17, 1
    %p138 = por %p136, %p137
    %p140 = scmp.ne.s32.totalorder %s125, %s139
    %p141 = scmp.eq.s32.totalorder %s17, 0
    %p142 = por %p140, %p141
    %s143 = ssub.s32 %s18, %s30
    %s144 = ssub.s32 %s19, %s26
    %s145 = sor.u32 %s143, %s144
    %p146 = scmp.eq.s32.totalorder %s145, 0
    %s148 = sadd.s32 %s147, 1
    %s149 = scalar_select %p146, %s147, %s148
    %p152 = pneg %p146
    %p153 = scmp.eq.s32.totalorder %s11, 1
    %p154 = por %p152, %p153
    %p155 = scmp.ne.s32.totalorder %s147, %s150
    %p156 = scmp.eq.s32.totalorder %s11, 0
    %p157 = por %p155, %p156
    %p158 = scmp.ne.s32.totalorder %s147, %s150
    %p159 = scmp.eq.s32.totalorder %s16, 1
    %p160 = por %p158, %p159
    %p161 = scmp.ne.s32.totalorder %s150, %s151
    %p162 = scmp.eq.s32.totalorder %s16, 0
    %p163 = por %p161, %p162
    %p164 = scmp.ne.s32.totalorder %s150, %s151
    %p165 = scmp.eq.s32.totalorder %s17, 1
    %p166 = por %p164, %p165
    %p168 = scmp.ne.s32.totalorder %s151, %s167
    %p169 = scmp.eq.s32.totalorder %s17, 0
    %p170 = por %p168, %p169
    %p171 = scmp.le.s32.totalorder 1, %s11
    %p172 = scmp.lt.s32.totalorder %s11, 3
    %p173 = pnand %p171, %p172
    %p174 = pneg %p173
    // Predicated region
    $region9: #{multi_layer_perceptron.1} parent=5 // pred_check
      _
    $region10: #{multi_layer_perceptron.1} parent=5 // pred_check_branch
      %176 = sbr.rel (%p173) target = $region12
    $region11: #{multi_layer_perceptron.1} parent=5 // pred_region
      %s177 = ssub.s32 %s11, 1
      // Predicated region
      $region13: #{multi_layer_perceptron.1} parent=11 // pred_check
        %p178 = pneg %p72
      $region14: #{multi_layer_perceptron.1} parent=11 // pred_check_branch
        %180 = sbr.rel (%p178) target = $region16
      $region15: #{multi_layer_perceptron.1} parent=11 // pred_region
        _
      $region16: #{multi_layer_perceptron.1} parent=11 // pred_fallthru
        _
      // Predicated region
      $region17: #{multi_layer_perceptron.1} parent=11 // pred_check
        %p181 = pneg %p93
      $region18: #{multi_layer_perceptron.1} parent=11 // pred_check_branch
        %183 = sbr.rel (%p181) target = $region20
      $region19: #{multi_layer_perceptron.1} parent=11 // pred_region
        _
      $region20: #{multi_layer_perceptron.1} parent=11 // pred_fallthru
        _
      // Predicated region
      $region21: #{multi_layer_perceptron.1} parent=11 // pred_check
        %p184 = pneg %p114
      $region22: #{multi_layer_perceptron.1} parent=11 // pred_check_branch
        %186 = sbr.rel (%p184) target = $region24
      $region23: #{multi_layer_perceptron.1} parent=11 // pred_region
        _
      $region24: #{multi_layer_perceptron.1} parent=11 // pred_fallthru
        _
      // Predicated region
      $region25: #{multi_layer_perceptron.1} parent=11 // pred_check
        %p187 = pneg %p135
      $region26: #{multi_layer_perceptron.1} parent=11 // pred_check_branch
        %189 = sbr.rel (%p187) target = $region28
      $region27: #{multi_layer_perceptron.1} parent=11 // pred_region
        _
      $region28: #{multi_layer_perceptron.1} parent=11 // pred_fallthru
        _
    $region12: #{multi_layer_perceptron.1} parent=5 // pred_fallthru
      _
    %p190 = scmp.lt.s32.totalorder %s11, 2
    // Predicated region
    $region29: #{multi_layer_perceptron.1} parent=5 // pred_check
      %p191 = pneg %p190
    $region30: #{multi_layer_perceptron.1} parent=5 // pred_check_branch
      %193 = sbr.rel (%p191) target = $region32
    $region31: #{multi_layer_perceptron.1} parent=5 // pred_region
      // Predicated region
      $region33: #{multi_layer_perceptron.1} parent=31 // pred_check
        %p194 = pneg %p45
      $region34: #{multi_layer_perceptron.1} parent=31 // pred_check_branch
        %196 = sbr.rel (%p194) target = $region36
      $region35: #{multi_layer_perceptron.1} parent=31 // pred_region
        %s197 = smul.u32 2, %s19
        %p198 = scmp.lt.s32.totalorder %s18, 1
        %s199 = scalar_select %p198, %s18, 1
        %p200 = scmp.lt.s32.totalorder %s197, 1
        %s201 = scalar_select %p200, %s197, 1
        %s202 = smul.addr %s199, 8
        %s203 = sadd.s32 %s201, %s202
        %s204 = smul.addr %s203, 8
        %s205 = scalar_lea.vmem %s0, %s204
        %s206 = smul.u32 2, %s19
      $region36: #{multi_layer_perceptron.1} parent=31 // pred_fallthru
        _
    $region32: #{multi_layer_perceptron.1} parent=5 // pred_fallthru
      _
    %p207 = scmp.le.s32.totalorder 1, %s11
    %p208 = scmp.lt.s32.totalorder %s11, 3
    %p209 = pnand %p207, %p208
    %p210 = pneg %p209
    // Predicated region
    $region37: #{multi_layer_perceptron.1} parent=5 // pred_check
      _
    $region38: #{multi_layer_perceptron.1} parent=5 // pred_check_branch
      %212 = sbr.rel (%p209) target = $region40
    $region39: #{multi_layer_perceptron.1} parent=5 // pred_region
      %s213 = ssub.s32 %s11, 1
      %s214 = smul.u32 2, %s21
      %p215 = scmp.lt.s32.totalorder %s20, 1
      %s216 = scalar_select %p215, %s20, 1
      %p217 = scmp.lt.s32.totalorder %s214, 1
      %s218 = scalar_select %p217, %s214, 1
      %s219 = smul.addr %s216, 8
      %s220 = sadd.s32 %s218, %s219
      %s221 = smul.addr %s220, 8
      %s222 = scalar_lea.vmem %s0, %s221
      %p223 = pneg %p51
      %p224 = pneg %p48
      %p225 = pneg %p72
      %p226 = pneg %p69
      %p227 = pneg %p93
      %p228 = pneg %p90
      %p229 = pneg %p114
      %p230 = pneg %p111
      %p231 = pneg %p135
      %p232 = pneg %p132
      %p233 = pneg %p163
      %p234 = pneg %p160
      %s235 = smul.u32 2, %s21
      %p236 = scmp.lt.s32.totalorder %s20, 1
      %s237 = scalar_select %p236, %s20, 1
      %p238 = scmp.lt.s32.totalorder %s235, 1
      %s239 = scalar_select %p238, %s235, 1
      %s240 = smul.addr %s237, 8
      %s241 = sadd.s32 %s239, %s240
      %s242 = smul.addr %s241, 8
      %s243 = scalar_lea.vmem %s5, %s242
      %s244 = smul.u32 2, %s21
      %p245 = scmp.lt.s32.totalorder %s20, 1
      %s246 = scalar_select %p245, %s20, 1
      %p247 = scmp.lt.s32.totalorder %s244, 1
      %s248 = scalar_select %p247, %s244, 1
      %s249 = smul.addr %s246, 8
      %s250 = sadd.s32 %s248, %s249
      %s251 = smul.addr %s250, 8
      %s252 = scalar_lea.vmem %s0, %s251
      %s253 = smul.u32 2, %s21
      %s254 = smul.u32 2, %s21
      %p255 = scmp.lt.s32.totalorder %s20, 1
      %s256 = scalar_select %p255, %s20, 1
      %p257 = scmp.lt.s32.totalorder %s254, 1
      %s258 = scalar_select %p257, %s254, 1
      %s259 = smul.addr %s256, 8
      %s260 = sadd.s32 %s258, %s259
      %s261 = smul.addr %s260, 8
      %s262 = scalar_lea.vmem %s5, %s261
      %s263 = smul.u32 2, %s21
      %v264 = vld [vmem:[%s1] sm:$0xff]
      %v265 = vld [vmem:[%s1 + $0x8] sm:$0xff]
      %v266 = vld [vmem:[%s1 + $0x10] sm:$0xff]
      %v267 = vld [vmem:[%s1 + $0x18] sm:$0xff]
      %v268 = vld [vmem:[%s3] sm:$0xff]
      %v269 = vld [vmem:[%s3 + $0x8] sm:$0xff]
      %v270 = vld [vmem:[%s3 + $0x10] sm:$0xff]
      %v271 = vld [vmem:[%s3 + $0x18] sm:$0xff]
      %v272 = vld [vmem:[%s2] sm:$0xff]
      %v273 = vld [vmem:[%s2 + $0x8] sm:$0xff]
      %v274 = vld [vmem:[%s2 + $0x10] sm:$0xff]
      %v275 = vld [vmem:[%s2 + $0x18] sm:$0xff]
      %v276 = vld [vmem:[%s4] sm:$0xff]
      %v277 = vld [vmem:[%s4 + $0x8] sm:$0xff]
      %v278 = vld [vmem:[%s4 + $0x10] sm:$0xff]
      %v279 = vld [vmem:[%s4 + $0x18] sm:$0xff]
      %v280 = vld [vmem:[%s252] sm:$0xff]
      %v281 = vld [vmem:[%s252 + $0x8] sm:$0xff]
      %v282 = vld [vmem:[%s252 + $0x10] sm:$0xff]
      %v283 = vld [vmem:[%s252 + $0x18] sm:$0xff]
      %v284 = vld [vmem:[%s252 + $0x20] sm:$0xff]
      %v285 = vld [vmem:[%s252 + $0x28] sm:$0xff]
      %v286 = vld [vmem:[%s252 + $0x30] sm:$0xff]
      %v287 = vld [vmem:[%s252 + $0x38] sm:$0xff]
      %289 = vset.pattern.permute.xlu0 0
      %290 = vperm.xlu0 %289, %v272
      %v291 = vpop.permute.xlu0 %290
      %294 = vset.pattern.permute.xlu0 0
      %295 = vperm.xlu0 %294, %v273
      %v296 = vpop.permute.xlu0 %295
      %299 = vset.pattern.permute.xlu0 0
      %300 = vperm.xlu0 %299, %v274
      %v301 = vpop.permute.xlu0 %300
      %304 = vset.pattern.permute.xlu0 0
      %305 = vperm.xlu0 %304, %v275
      %v306 = vpop.permute.xlu0 %305
      %vm308 = vcmask 261120
      %v310 = vsel %vm308, %v264, 0
      %v313 = vsel %vm308, %v265, 0
      %v316 = vsel %vm308, %v266, 0
      %v319 = vsel %vm308, %v267, 0
      %321 = vmatprep.subr.mxu0 %v281
      %322 = vmatpush1.msra.mxu0 %v280
      %323 = vmatprep.subr.mxu0 %v283
      %324 = vmatpush1.msra.mxu0 %v282
      %325 = vmatprep.subr.mxu0 %v285
      %326 = vmatpush1.msra.mxu0 %v284
      %327 = vmatprep.subr.mxu0 %v287
      %328 = vmatpush1.msra.mxu0 %v286
      %329 = vmatprep.subr.mxu0 0.0
      %330 = vmatpush1.msra.mxu0 0.0
      %331 = vmatprep.subr.mxu0 0.0
      %332 = vmatpush1.msra.mxu0 0.0
      %333 = vmatprep.subr.mxu0 0.0
      %334 = vmatpush1.msra.mxu0 0.0
      %335 = vmatprep.subr.mxu0 0.0
      %336 = vmatpush1.msra.mxu0 0.0
      %337 = vmatprep.subr.mxu0 0.0
      %338 = vmatpush1.msra.mxu0 0.0
      %339 = vmatprep.subr.mxu0 0.0
      %340 = vmatpush1.msra.mxu0 0.0
      %341 = vmatprep.subr.mxu0 0.0
      %342 = vmatpush1.msra.mxu0 0.0
      %343 = vmatprep.subr.mxu0 0.0
      %344 = vmatpush1.msra.mxu0 0.0
      %345 = vmatprep.subr.mxu0 0.0
      %346 = vmatpush1.msra.mxu0 0.0
      %347 = vmatprep.subr.mxu0 0.0
      %348 = vmatpush1.msra.mxu0 0.0
      %349 = vmatprep.subr.mxu0 0.0
      %350 = vmatpush1.msra.mxu0 0.0
      %351 = vmatprep.subr.mxu0 0.0
      %352 = vmatpush1.msra.mxu0 0.0
      %353 = vmatprep.subr.mxu0 0.0
      %354 = vmatpush1.msra.mxu0 0.0
      %355 = vmatprep.subr.mxu0 0.0
      %356 = vmatpush1.msra.mxu0 0.0
      %357 = vmatprep.subr.mxu0 0.0
      %358 = vmatpush1.msra.mxu0 0.0
      %359 = vmatprep.subr.mxu0 0.0
      %360 = vmatpush1.msra.mxu0 0.0
      %361 = vmatprep.subr.mxu0 0.0
      %362 = vmatpush1.msra.mxu0 0.0
      %363 = vmatprep.subr.mxu0 0.0
      %364 = vmatpush1.msra.mxu0 0.0
      %365 = vmatprep.subr.mxu0 0.0
      %366 = vmatpush1.msra.mxu0 0.0
      %367 = vmatprep.subr.mxu0 0.0
      %368 = vmatpush1.msra.mxu0 0.0
      %369 = vmatprep.subr.mxu0 0.0
      %370 = vmatpush1.msra.mxu0 0.0
      %371 = vmatprep.subr.mxu0 0.0
      %372 = vmatpush1.msra.mxu0 0.0
      %373 = vmatprep.subr.mxu0 0.0
      %374 = vmatpush1.msra.mxu0 0.0
      %375 = vmatprep.subr.mxu0 0.0
      %376 = vmatpush1.msra.mxu0 0.0
      %377 = vmatprep.subr.mxu0 0.0
      %378 = vmatpush1.msra.mxu0 0.0
      %379 = vmatprep.subr.mxu0 0.0
      %380 = vmatpush1.msra.mxu0 0.0
      %381 = vmatprep.subr.mxu0 0.0
      %382 = vmatpush1.msra.mxu0 0.0
      %383 = vmatprep.subr.mxu0 0.0
      %384 = vmatpush1.msra.mxu0 0.0
      %385 = vmatprep.mubr.f32.mxu0 0.0
      %386 = vmatmul.mubr.f32.gmra.mrb[0].mxu0 %v310
      %v387 = vpop.f32.mrb[0].mxu0
      %v388 = vadd.f32 %v291, %v387
      %v389 = vpop.f32.mrb[0].mxu0
      %v390 = vadd.f32 %v291, %v389
      %391 = vmatprep.mubr.f32.mxu0 0.0
      %392 = vmatmul.mubr.f32.gmra.mrb[0].mxu0 %v313
      %v393 = vpop.f32.mrb[0].mxu0
      %v394 = vadd.f32 %v296, %v393
      %v395 = vpop.f32.mrb[0].mxu0
      %v396 = vadd.f32 %v296, %v395
      %397 = vmatprep.mubr.f32.mxu0 0.0
      %398 = vmatmul.mubr.f32.gmra.mrb[0].mxu0 %v316
      %v399 = vpop.f32.mrb[0].mxu0
      %v400 = vadd.f32 %v301, %v399
      %v401 = vpop.f32.mrb[0].mxu0
      %v402 = vadd.f32 %v301, %v401
      %403 = vmatprep.mubr.f32.mxu0 0.0
      %404 = vmatmul.mubr.f32.gmra.mrb[0].mxu0 %v319
      %v405 = vpop.f32.mrb[0].mxu0
      %v406 = vadd.f32 %v306, %v405
      %v407 = vpop.f32.mrb[0].mxu0
      %v408 = vadd.f32 %v306, %v407
      %409 = vdwg.mxu0
      %v410 = vmax.f32 %v388, 0.0
      %v411 = vmax.f32 %v390, 0.0
      %v412 = vmax.f32 %v394, 0.0
      %v413 = vmax.f32 %v396, 0.0
      %v414 = vmax.f32 %v400, 0.0
      %v415 = vmax.f32 %v402, 0.0
      %v416 = vmax.f32 %v406, 0.0
      %v417 = vmax.f32 %v408, 0.0
      %419 = vset.pattern.permute.xlu0 0
      %420 = vperm.xlu0 %419, %v276
      %v421 = vpop.permute.xlu0 %420
      %424 = vset.pattern.permute.xlu0 0
      %425 = vperm.xlu0 %424, %v277
      %v426 = vpop.permute.xlu0 %425
      %429 = vset.pattern.permute.xlu0 0
      %430 = vperm.xlu0 %429, %v278
      %v431 = vpop.permute.xlu0 %430
      %434 = vset.pattern.permute.xlu0 0
      %435 = vperm.xlu0 %434, %v279
      %v436 = vpop.permute.xlu0 %435
      %v439 = vsel %vm308, %v268, 0
      %v442 = vsel %vm308, %v269, 0
      %v445 = vsel %vm308, %v270, 0
      %v448 = vsel %vm308, %v271, 0
      %450 = vmatprep.subr.mxu0 %v411
      %451 = vmatpush1.msra.mxu0 %v410
      %452 = vmatprep.subr.mxu0 %v413
      %453 = vmatpush1.msra.mxu0 %v412
      %454 = vmatprep.subr.mxu0 %v415
      %455 = vmatpush1.msra.mxu0 %v414
      %456 = vmatprep.subr.mxu0 %v417
      %457 = vmatpush1.msra.mxu0 %v416
      %458 = vmatprep.subr.mxu0 0.0
      %459 = vmatpush1.msra.mxu0 0.0
      %460 = vmatprep.subr.mxu0 0.0
      %461 = vmatpush1.msra.mxu0 0.0
      %462 = vmatprep.subr.mxu0 0.0
      %463 = vmatpush1.msra.mxu0 0.0
      %464 = vmatprep.subr.mxu0 0.0
      %465 = vmatpush1.msra.mxu0 0.0
      %466 = vmatprep.subr.mxu0 0.0
      %467 = vmatpush1.msra.mxu0 0.0
      %468 = vmatprep.subr.mxu0 0.0
      %469 = vmatpush1.msra.mxu0 0.0
      %470 = vmatprep.subr.mxu0 0.0
      %471 = vmatpush1.msra.mxu0 0.0
      %472 = vmatprep.subr.mxu0 0.0
      %473 = vmatpush1.msra.mxu0 0.0
      %474 = vmatprep.subr.mxu0 0.0
      %475 = vmatpush1.msra.mxu0 0.0
      %476 = vmatprep.subr.mxu0 0.0
      %477 = vmatpush1.msra.mxu0 0.0
      %478 = vmatprep.subr.mxu0 0.0
      %479 = vmatpush1.msra.mxu0 0.0
      %480 = vmatprep.subr.mxu0 0.0
      %481 = vmatpush1.msra.mxu0 0.0
      %482 = vmatprep.subr.mxu0 0.0
      %483 = vmatpush1.msra.mxu0 0.0
      %484 = vmatprep.subr.mxu0 0.0
      %485 = vmatpush1.msra.mxu0 0.0
      %486 = vmatprep.subr.mxu0 0.0
      %487 = vmatpush1.msra.mxu0 0.0
      %488 = vmatprep.subr.mxu0 0.0
      %489 = vmatpush1.msra.mxu0 0.0
      %490 = vmatprep.subr.mxu0 0.0
      %491 = vmatpush1.msra.mxu0 0.0
      %492 = vmatprep.subr.mxu0 0.0
      %493 = vmatpush1.msra.mxu0 0.0
      %494 = vmatprep.subr.mxu0 0.0
      %495 = vmatpush1.msra.mxu0 0.0
      %496 = vmatprep.subr.mxu0 0.0
      %497 = vmatpush1.msra.mxu0 0.0
      %498 = vmatprep.subr.mxu0 0.0
      %499 = vmatpush1.msra.mxu0 0.0
      %500 = vmatprep.subr.mxu0 0.0
      %501 = vmatpush1.msra.mxu0 0.0
      %502 = vmatprep.subr.mxu0 0.0
      %503 = vmatpush1.msra.mxu0 0.0
      %504 = vmatprep.subr.mxu0 0.0
      %505 = vmatpush1.msra.mxu0 0.0
      %506 = vmatprep.subr.mxu0 0.0
      %507 = vmatpush1.msra.mxu0 0.0
      %508 = vmatprep.subr.mxu0 0.0
      %509 = vmatpush1.msra.mxu0 0.0
      %510 = vmatprep.subr.mxu0 0.0
      %511 = vmatpush1.msra.mxu0 0.0
      %512 = vmatprep.subr.mxu0 0.0
      %513 = vmatpush1.msra.mxu0 0.0
      %514 = vmatprep.mubr.f32.mxu0 0.0
      %515 = vmatmul.mubr.f32.gmra.mrb[0].mxu0 %v439
      %v516 = vpop.f32.mrb[0].mxu0
      %v517 = vadd.f32 %v421, %v516
      %v518 = vpop.f32.mrb[0].mxu0
      %v519 = vadd.f32 %v421, %v518
      %520 = vmatprep.mubr.f32.mxu0 0.0
      %521 = vmatmul.mubr.f32.gmra.mrb[0].mxu0 %v442
      %v522 = vpop.f32.mrb[0].mxu0
      %v523 = vadd.f32 %v426, %v522
      %v524 = vpop.f32.mrb[0].mxu0
      %v525 = vadd.f32 %v426, %v524
      %526 = vmatprep.mubr.f32.mxu0 0.0
      %527 = vmatmul.mubr.f32.gmra.mrb[0].mxu0 %v445
      %v528 = vpop.f32.mrb[0].mxu0
      %v529 = vadd.f32 %v431, %v528
      %v530 = vpop.f32.mrb[0].mxu0
      %v531 = vadd.f32 %v431, %v530
      %532 = vmatprep.mubr.f32.mxu0 0.0
      %533 = vmatmul.mubr.f32.gmra.mrb[0].mxu0 %v448
      %v534 = vpop.f32.mrb[0].mxu0
      %v535 = vadd.f32 %v436, %v534
      %v536 = vpop.f32.mrb[0].mxu0
      %v537 = vadd.f32 %v436, %v536
      %538 = vdwg.mxu0
      %v539 = vadd.f32 %v517, %v280
      %v540 = vadd.f32 %v519, %v281
      %v541 = vadd.f32 %v523, %v282
      %v542 = vadd.f32 %v525, %v283
      %v543 = vadd.f32 %v529, %v284
      %v544 = vadd.f32 %v531, %v285
      %v545 = vadd.f32 %v535, %v286
      %v546 = vadd.f32 %v537, %v287
      %547 = vst [vmem:[%s262] sm:$0xff] %v539
      %548 = vst [vmem:[%s262 + $0x8] sm:$0xff] %v540
      %549 = vst [vmem:[%s262 + $0x10] sm:$0xff] %v541
      %550 = vst [vmem:[%s262 + $0x18] sm:$0xff] %v542
      %551 = vst [vmem:[%s262 + $0x20] sm:$0xff] %v543
      %552 = vst [vmem:[%s262 + $0x28] sm:$0xff] %v544
      %553 = vst [vmem:[%s262 + $0x30] sm:$0xff] %v545
      %554 = vst [vmem:[%s262 + $0x38] sm:$0xff] %v546
      %s555 = smul.u32 2, %s21
      %p556 = scmp.lt.s32.totalorder %s20, 1
      %s557 = scalar_select %p556, %s20, 1
      %p558 = scmp.lt.s32.totalorder %s555, 1
      %s559 = scalar_select %p558, %s555, 1
      %s560 = smul.addr %s557, 8
      %s561 = sadd.s32 %s559, %s560
      %s562 = smul.addr %s561, 8
      %s563 = scalar_lea.vmem %s5, %s562
      // Predicated region
      $region41: #{multi_layer_perceptron.1} parent=39 // pred_check
        %p564 = pneg %p160
      $region42: #{multi_layer_perceptron.1} parent=39 // pred_check_branch
        %566 = sbr.rel (%p564) target = $region44
      $region43: #{multi_layer_perceptron.1} parent=39 // pred_region
        %s567 = smul.u32 2, %s21
      $region44: #{multi_layer_perceptron.1} parent=39 // pred_fallthru
        _
    $region40: #{multi_layer_perceptron.1} parent=5 // pred_fallthru
      _
    %p568 = scmp.le.s32.totalorder 2, %s11
    // Predicated region
    $region45: #{multi_layer_perceptron.1} parent=5 // pred_check
      %p569 = pneg %p568
    $region46: #{multi_layer_perceptron.1} parent=5 // pred_check_branch
      %571 = sbr.rel (%p569) target = $region48
    $region47: #{multi_layer_perceptron.1} parent=5 // pred_region
      %s572 = ssub.s32 %s11, 2
      // Predicated region
      $region49: #{multi_layer_perceptron.1} parent=47 // pred_check
        %p573 = pneg %p166
      $region50: #{multi_layer_perceptron.1} parent=47 // pred_check_branch
        %575 = sbr.rel (%p573) target = $region52
      $region51: #{multi_layer_perceptron.1} parent=47 // pred_region
        %s576 = smul.u32 2, %s23
        %p577 = scmp.lt.s32.totalorder %s22, 1
        %s578 = scalar_select %p577, %s22, 1
        %p579 = scmp.lt.s32.totalorder %s576, 1
        %s580 = scalar_select %p579, %s576, 1
        %s581 = smul.addr %s578, 8
        %s582 = sadd.s32 %s580, %s581
        %s583 = smul.addr %s582, 8
        %s584 = scalar_lea.vmem %s5, %s583
      $region52: #{multi_layer_perceptron.1} parent=47 // pred_fallthru
        _
    $region48: #{multi_layer_perceptron.1} parent=5 // pred_fallthru
      _
  $region6: #{multi_layer_perceptron.1} parent=0 // loop_footer
    %s15 = sadd.s32 1, %s11
  $region7: #{multi_layer_perceptron.1} parent=0 // loop_footer_branch
    %10 = sbr.rel target = $region3
  $region8: #{multi_layer_perceptron.1} parent=0 // loop_exit
    _

</llo_original>
